<compile_context>
chip_gen: v6e
topology: v6e:2x2x1
jax: 0.10.0
libtpu: 0.0.40
codegen_flags: <defaults>
</compile_context>

<pallas_src>
import functools
import math

import jax
import jax.numpy as jnp
from jax.experimental import pallas as pl
from jax.experimental.pallas import tpu as pltpu


def _round_up(x: int, m: int) -> int:
    return ((x + m - 1) // m) * m


def _cdiv(a: int, b: int) -> int:
    return -(-a // b)


# ---------------------------------------------------------------------------
# Kernels
# ---------------------------------------------------------------------------
def _sum_pool_kernel_direct(x_ref, o_ref):
    """Single L block: x_ref (TB, L, TD) -> o_ref (TB, TD); no scratch."""
    o_ref[...] = jnp.sum(x_ref[...], axis=1, dtype=jnp.float32).astype(o_ref.dtype)


def _sum_pool_kernel_acc(x_ref, o_ref, acc_ref, *, L, TL, mask_last):
    """Blocked L: accumulate partial sums in a resident f32 VMEM scratch."""
    l = pl.program_id(2)

    @pl.when(l == 0)
    def _():
        acc_ref[...] = jnp.zeros_like(acc_ref)

    x = x_ref[...]
    if mask_last:
        # The last L block overhangs the array; Pallas pads it with undefined
        # data which must not leak into the sum. Mask by sublane index.
        valid = L - l * TL
        rows = jax.lax.broadcasted_iota(jnp.int32, x.shape, 1)
        x = jnp.where(rows < valid, x, 0)

    acc_ref[...] += jnp.sum(x, axis=1, dtype=jnp.float32)

    @pl.when(l == pl.num_programs(2) - 1)
    def _():
        o_ref[...] = acc_ref[...].astype(o_ref.dtype)


# ---------------------------------------------------------------------------
# Tile selection with honest VMEM accounting
# ---------------------------------------------------------------------------
def _block_bytes(TB, TL, TD, L, in_itemsize, out_itemsize, with_acc):
    lane = _round_up(max(TD, 1), 128)              # lane padding for small D
    sub = TL if TL == L else _round_up(TL, 8)
    tb8 = _round_up(max(TB, 1), 8)
    b_in = 2 * tb8 * sub * lane * in_itemsize      # double-buffered input block
    b_out = 2 * tb8 * lane * out_itemsize          # double-buffered output block
    b_acc = tb8 * lane * 4 if with_acc else 0      # resident f32 accumulator
    b_cast = tb8 * sub * lane * 4 if in_itemsize < 4 else 0  # possible f32 temp
    return b_in + b_out + b_acc + b_cast


def _choose_tiles(B, L, D, in_itemsize, out_itemsize, budget, l_tile, b_tile):
    # ---- lane (D) tile: keep full D unless even a minimal stripe overflows.
    TD = D
    if _block_bytes(8, min(L, 8), D, L, in_itemsize, out_itemsize, True) > budget:
        for cand in (2048, 1024, 512, 256):
            if D % cand == 0:
                TD = cand
                break
    # TODO(synk): for D < 128 a lane-dense (B, L*D) layout with an in-kernel
    # stride-D roll/add tree would restore contiguous DMA rows; here small D is
    # only charged to the VMEM budget via lane padding.

    # ---- reduction (L) tile: full L when it fits, else multiples of 8.
    if l_tile is not None:
        TL = min(int(l_tile), L)
        if TL < L:
            TL = _round_up(TL, 8)
    else:
        TL = L
        while TL > 8 and _block_bytes(8, TL, TD, L, in_itemsize, out_itemsize, True) > budget:
            TL = _round_up((TL + 1) // 2, 8)
    if TL >= L:
        TL = L
    nl = _cdiv(L, TL)

    # ---- row (B) tile: as many 8-row stripes as the budget allows.
    nd = D // TD
    if b_tile is not None:
        TB = min(int(b_tile), B)
        if TB < B:
            TB = _round_up(TB, 8)
        if TB >= B:
            TB = B
    else:
        stripe8 = _block_bytes(8, TL, TD, L, in_itemsize, out_itemsize, nl > 1)
        TB = max(8, (budget // max(stripe8, 1)) * 8)
        TB = min(TB, 1024)
        if TB >= B:
            TB = B
            if B > 8 and nd == 1:
                # Keep >= 2 parallel blocks so both TensorCores of a v7x chip
                # get work (negligible extra step cost on 1-TC chips).
                TB = _round_up(_cdiv(B, 2), 8)
    return TB, TL, TD


# ---------------------------------------------------------------------------
# Wrapper
# ---------------------------------------------------------------------------
def masked_sum_pooling(x, *, l_tile=None, b_tile=None, vmem_block_budget_bytes=None):
    """Pallas equivalent of MaskedSumPooling().forward(x): sum over dim=1.

    Accepts any ndim >= 2 input; trailing dims after axis 1 are flattened into
    the lane dimension and restored on output.
    """
    if x.ndim < 2:
        raise ValueError("MaskedSumPooling expects input with ndim >= 2")

    B, L = x.shape[0], x.shape[1]
    trail = x.shape[2:]
    D = math.prod(trail) if trail else 1
    x3 = x.reshape(B, L, D)

    in_itemsize = jnp.dtype(x.dtype).itemsize
    out_itemsize = in_itemsize

    # VMEM limit from the actual chip: 128 MiB (v5e/v6e) -> 64 MiB scoped,
    # 64 MiB (v7x) -> 48 MiB scoped, leaving headroom for Mosaic scratch.
    vmem_cap = 128 * 1024 * 1024
    try:
        info = pltpu.get_tpu_info()
        vmem_cap = int(getattr(info, "vmem_capacity_bytes", vmem_cap))
    except Exception:
        pass
    vmem_limit = min(64 * 1024 * 1024, (vmem_cap * 3) // 4)
    if vmem_block_budget_bytes is None:
        vmem_block_budget_bytes = max(4 * 1024 * 1024, vmem_limit // 4)

    TB, TL, TD = _choose_tiles(B, L, D, in_itemsize, out_itemsize,
                               vmem_block_budget_bytes, l_tile, b_tile)

    nb = _cdiv(B, TB)
    nd = D // TD
    nl = _cdiv(L, TL)
    mask_last = (L % TL) != 0

    if nl == 1:
        kernel = _sum_pool_kernel_direct
        scratch_shapes = ()
    else:
        kernel = functools.partial(_sum_pool_kernel_acc, L=L, TL=TL, mask_last=mask_last)
        scratch_shapes = (pltpu.VMEM((TB, TD), jnp.float32),)

    out = pl.pallas_call(
        kernel,
        out_shape=jax.ShapeDtypeStruct((B, D), x.dtype),
        grid_spec=pltpu.PrefetchScalarGridSpec(
            num_scalar_prefetch=0,
            grid=(nb, nd, nl),
            in_specs=[pl.BlockSpec((TB, TL, TD), lambda b, d, l: (b, l, d))],
            out_specs=pl.BlockSpec((TB, TD), lambda b, d, l: (b, d)),
            scratch_shapes=scratch_shapes,
        ),
        compiler_params=pltpu.CompilerParams(
            dimension_semantics=("parallel", "parallel", "arbitrary"),
            vmem_limit_bytes=vmem_limit,
        ),
    )(x3)

    return out.reshape((B,) + trail)


if __name__ == "__main__":
    k0, k1, k2, k3 = jax.random.split(jax.random.PRNGKey(0), 4)

    # 1) Typical (batch, seq, embedding_dim) input -- single-L fast path.
    x = jax.random.normal(k0, (2, 16, 32), dtype=jnp.float32)
    out = jax.block_until_ready(masked_sum_pooling(x))
    ref = jnp.sum(x, axis=1)
    assert out.shape == (2, 32), out.shape
    assert jnp.allclose(out, ref, atol=1e-5, rtol=1e-5), "mismatch (single-L)"

    # 2) Blocked-L path with an unaligned remainder (in-kernel mask, no pad).
    x2 = jax.random.normal(k1, (5, 37, 48), dtype=jnp.float32)
    out2 = jax.block_until_ready(masked_sum_pooling(x2, l_tile=8))
    ref2 = jnp.sum(x2, axis=1)
    assert out2.shape == (5, 48), out2.shape
    assert jnp.allclose(out2, ref2, atol=1e-4, rtol=1e-4), "mismatch (blocked L)"

    # 3) Batch tiling with an overhanging last block (masked output stores).
    x3 = jax.random.normal(k2, (20, 12, 64), dtype=jnp.float32)
    out3 = jax.block_until_ready(masked_sum_pooling(x3, b_tile=8))
    ref3 = jnp.sum(x3, axis=1)
    assert out3.shape == (20, 64), out3.shape
    assert jnp.allclose(out3, ref3, atol=1e-4, rtol=1e-4), "mismatch (tiled B)"

    # 4) bf16 input -- in-kernel f32 accumulation (also exercises the B split
    #    that keeps >= 2 parallel blocks).
    x4 = jax.random.normal(k3, (16, 24, 32), dtype=jnp.bfloat16)
    out4 = jax.block_until_ready(masked_sum_pooling(x4))
    ref4 = jnp.sum(x4.astype(jnp.float32), axis=1)
    assert out4.shape == (16, 32), out4.shape
    assert jnp.allclose(out4.astype(jnp.float32), ref4, atol=0.25, rtol=0.02), "mismatch (bf16)"

    print("KERNEL_OK")
</pallas_src>

<mosaic_0001>
module attributes {stable_mosaic.version = 11 : i64} {
  func.func @_sum_pool_kernel_direct(%arg0: i32, %arg1: i32, %arg2: i32, %arg3: memref<2x16x32xf32, #tpu.memory_space<vmem>>, %arg4: memref<2x32xf32, #tpu.memory_space<vmem>>) attributes {dimension_semantics = [#tpu.dimension_semantics<parallel>, #tpu.dimension_semantics<parallel>, #tpu.dimension_semantics<arbitrary>], iteration_bounds = array<i64: 1, 1, 1>, scalar_prefetch = 0 : i64, scratch_operands = 0 : i64, tpu.core_type = #tpu.core_type<tc>, window_params = [{transform_indices = @transform_0, window_bounds = array<i64: 2, 16, 32>}, {transform_indices = @transform_1, window_bounds = array<i64: 2, 32>}]} {
    %c0 = arith.constant 0 : index
    %c0_0 = arith.constant 0 : index
    %c0_1 = arith.constant 0 : index
    %0 = vector.load %arg3[%c0, %c0_0, %c0_1] : memref<2x16x32xf32, #tpu.memory_space<vmem>>, vector<2x16x32xf32>
    %cst = arith.constant dense<0.000000e+00> : vector<2x32xf32>
    %1 = vector.multi_reduction <add>, %0, %cst [1] : vector<2x16x32xf32> to vector<2x32xf32>
    %c0_2 = arith.constant 0 : index
    %c0_3 = arith.constant 0 : index
    %2 = vector.load %arg4[%c0_2, %c0_3] : memref<2x32xf32, #tpu.memory_space<vmem>>, vector<2x32xf32>
    tpu.vector_store %arg4[%c0_2, %c0_3], %1 {strides = array<i32>} : memref<2x32xf32, #tpu.memory_space<vmem>>, vector<2x32xf32>,
    return
  }
  func.func @transform_0(%arg0: i32, %arg1: i32, %arg2: i32) -> (i32, i32, i32) {
    %c0_i32 = arith.constant 0 : i32
    return %arg0, %arg2, %arg1 : i32, i32, i32
  }
  func.func @transform_1(%arg0: i32, %arg1: i32, %arg2: i32) -> (i32, i32) {
    %c0_i32 = arith.constant 0 : i32
    return %arg0, %arg1 : i32, i32
  }
}

</mosaic_0001>

<llo_original>
// kernel: tpu_custom_call.1
$region0: #{tpu_custom_call.1}
  #allocation0 [shape = 'u32[]', space=smem, size = 0x4, offset = 0x4, fixed_abs, tag = 'smem constant byte address 0x4 - core index']
  #allocation1 [shape = 'u32[144,128]{1,0:T(1,128)}', space=vmem, size = 0x12000, scoped, tag = 'internal scratch']
  %s0 = inlined_call_operand.hbm [shape: f32[2,16,32], index: 0, kind: input, shape index: {}]
  %s1 = inlined_call_operand.hbm [shape: f32[2,32], index: 1, kind: output, shape index: {}]
  %s2 = sld [smem:[#allocation0]]
  $region18: #{tpu_custom_call.1} parent=0
    _
  %s4 = ssub.s32 1, %s2
  %s5 = scalar_select 0, %s4, %s2
  $region1: #{tpu_custom_call.1} parent=0
    #allocation2 [shape = 'u8[16384]{0}', space=vmem, size = 0x4000, scoped, tag = 'input window, operand 0, single buffered']
    #allocation3 [shape = 's32[1]{0}', space=sflag, size = 0x4, scoped, tag = 'scoped memory for tpu_custom_call.1']
    #allocation4 [shape = 's32[1]{0}', space=sflag, size = 0x4, scoped, tag = 'scoped memory for tpu_custom_call.1']
    #allocation5 [shape = 'u8[1024]{0}', space=vmem, size = 0x400, scoped, tag = 'output window, operand 0, single buffered']
    %6 = vsyncpa [#allocation3], 0
    %7 = vsyncpa [#allocation4], 0
    // Predicated region
    $region2: #{tpu_custom_call.1} parent=1 // pred_check
      _
    $region3: #{tpu_custom_call.1} parent=1 // pred_check_branch
      %9 = sbr.rel (0) target = $region5
    $region4: #{tpu_custom_call.1} parent=1 // pred_region
      %s11 = ssub.s32 512, 512
      %12 = vsyncadd [#allocation3], %s11
      %s13 = sshll.u32 [#allocation2], 4
      %s14 = int_to_ptr.vmem [resolvable:$true] %s13
      %19 = dma.hbm_to_vmem [thread:$0]  %s0, 512, %s14, [#allocation3], 128, 128, 8
    $region5: #{tpu_custom_call.1} parent=1 // pred_fallthru
      _
    // Predicated region
    $region6: #{tpu_custom_call.1} parent=1 // pred_check
      _
    $region7: #{tpu_custom_call.1} parent=1 // pred_check_branch
      %21 = sbr.rel (0) target = $region9
    $region8: #{tpu_custom_call.1} parent=1 // pred_region
      %22 = dma.done [#allocation3], 512
    $region9: #{tpu_custom_call.1} parent=1 // pred_fallthru
      _
    %v23 = vld [vmem:[#allocation2] sm:$0xff]
    %v24 = vld [vmem:[#allocation2 + $0x8] sm:$0xff]
    %v25 = vld [vmem:[#allocation2 + $0x10] sm:$0xff]
    %v26 = vld [vmem:[#allocation2 + $0x18] sm:$0xff]
    %vm27 = vcmask 261120
    %v28 = vsel %vm27, %v23, 0.0
    %v29 = vsel %vm27, %v24, 0.0
    %v30 = vadd.f32 %v28, %v29
    %v31 = vrot.slane %v30, 4
    %v32 = vadd.f32 %v30, %v31
    %v33 = vrot.slane %v32, 2
    %v34 = vadd.f32 %v32, %v33
    %v35 = vrot.slane %v34, 1
    %v36 = vadd.f32 %v34, %v35
    %v37 = vsel %vm27, %v25, 0.0
    %v38 = vsel %vm27, %v26, 0.0
    %v39 = vadd.f32 %v37, %v38
    %v40 = vrot.slane %v39, 4
    %v41 = vadd.f32 %v39, %v40
    %v42 = vrot.slane %v41, 2
    %v43 = vadd.f32 %v41, %v42
    %v44 = vrot.slane %v43, 1
    %v45 = vadd.f32 %v43, %v44
    %vm48 = vcmask 1041409
    %v49 = vsel %vm48, %v45, %v36
    %vm51 = vcmask 254976
    %52 = vst.msk [vmem:[#allocation5] sm:$0x3] %vm51, %v49
    // Predicated region
    $region10: #{tpu_custom_call.1} parent=1 // pred_check
      _
    $region11: #{tpu_custom_call.1} parent=1 // pred_check_branch
      %54 = sbr.rel (0) target = $region13
    $region12: #{tpu_custom_call.1} parent=1 // pred_region
      %s56 = ssub.s32 32, 32
      %57 = vsyncadd [#allocation4], %s56
      %s59 = sshll.u32 [#allocation5], 4
      %s60 = int_to_ptr.vmem [resolvable:$true] %s59
      %62 = dma.vmem_to_hbm [thread:$0]  %s60, 32, %s1, [#allocation4]
    $region13: #{tpu_custom_call.1} parent=1 // pred_fallthru
      _
    // Predicated region
    $region14: #{tpu_custom_call.1} parent=1 // pred_check
      _
    $region15: #{tpu_custom_call.1} parent=1 // pred_check_branch
      %64 = sbr.rel (0) target = $region17
    $region16: #{tpu_custom_call.1} parent=1 // pred_region
      %65 = dma.done [#allocation4], 32
    $region17: #{tpu_custom_call.1} parent=1 // pred_fallthru
      _
    %66 = vsyncpa [#allocation3], 1
    %67 = vsyncpa [#allocation4], 1

</llo_original>
